<compile_context>
chip_gen: v5e
topology: v5e:2x2
jax: 0.10.0
libtpu: 0.0.40
codegen_flags: <defaults>
</compile_context>

<pallas_src>
import functools

import jax
import jax.numpy as jnp
from jax.experimental import pallas as pl
from jax.experimental.pallas import tpu as pltpu


def _round_up(v, m):
    return (v + m - 1) // m * m


def _mlp_kernel(x_ref, w1_ref, b1_ref, w2_ref, b2_ref,
                w3_ref, b3_ref, w4_ref, b4_ref, o_ref):
    # One batch tile of rows; all four layers fused in VMEM.
    # bf16 MXU operands, f32 accumulation / activations.
    x = x_ref[...]                                                     # bf16 [bm, d0]
    h = jnp.dot(x, w1_ref[...], preferred_element_type=jnp.float32) + b1_ref[...]
    h = jnp.maximum(h, 0.0)                                            # ReLU (f32, VPU)
    h = jnp.dot(h.astype(jnp.bfloat16), w2_ref[...],
                preferred_element_type=jnp.float32) + b2_ref[...]
    h = jnp.maximum(h, 0.0)
    h = jnp.dot(h.astype(jnp.bfloat16), w3_ref[...],
                preferred_element_type=jnp.float32) + b3_ref[...]
    h = jnp.maximum(h, 0.0)
    z = jnp.dot(h.astype(jnp.bfloat16), w4_ref[...],
                preferred_element_type=jnp.float32) + b4_ref[...]
    # sigmoid(z) = 0.5 * tanh(z/2) + 0.5  -- stays on the EUP, no inf intermediate.
    o_ref[...] = 0.5 * jnp.tanh(0.5 * z) + 0.5


@functools.partial(jax.jit, static_argnames=("block_rows",))
def mlp_forward(x, params, block_rows=128):
    """x: [B, D_in] float32. params: dict of [in, out] weights and (1, out) biases."""
    w1, b1 = params["w1"], params["b1"]
    w2, b2 = params["w2"], params["b2"]
    w3, b3 = params["w3"], params["b3"]
    w4, b4 = params["w4"], params["b4"]

    B, D_in = x.shape
    out_dim = w4.shape[1]                      # logical output width (1)

    # Lane-aligned padded widths (multiples of 128).
    d0 = _round_up(D_in, 128)
    d1 = _round_up(w1.shape[1], 128)           # 200 -> 256
    d2 = _round_up(w2.shape[1], 128)           # 100 -> 128
    d3 = _round_up(w3.shape[1], 128)           #  20 -> 128
    d4 = _round_up(out_dim, 128)               #   1 -> 128 (lane-dense output)

    # Batch tile: whole (padded) batch in one grid step when small, else block_rows.
    bm = _round_up(B, 8) if B <= block_rows else block_rows
    B_pad = _round_up(B, bm)

    def pad2(a, rows, cols, dtype):
        out = jnp.zeros((rows, cols), dtype)
        return out.at[:a.shape[0], :a.shape[1]].set(a.astype(dtype))

    # Zero padding is inert: padded activations are ReLU(0)=0 and padded weight
    # rows/cols are 0, so logical outputs are unchanged.
    xp = pad2(x, B_pad, d0, jnp.bfloat16)
    w1p = pad2(w1, d0, d1, jnp.bfloat16); b1p = pad2(b1, 1, d1, jnp.float32)
    w2p = pad2(w2, d1, d2, jnp.bfloat16); b2p = pad2(b2, 1, d2, jnp.float32)
    w3p = pad2(w3, d2, d3, jnp.bfloat16); b3p = pad2(b3, 1, d3, jnp.float32)
    w4p = pad2(w4, d3, d4, jnp.bfloat16); b4p = pad2(b4, 1, d4, jnp.float32)

    grid = (B_pad // bm,)

    def full(shape):
        return pl.BlockSpec(shape, lambda i: (0,) * len(shape))

    in_specs = [
        pl.BlockSpec((bm, d0), lambda i: (i, 0)),   # x: tiled over rows
        full((d0, d1)), full((1, d1)),              # weights/biases fully resident
        full((d1, d2)), full((1, d2)),
        full((d2, d3)), full((1, d3)),
        full((d3, d4)), full((1, d4)),
    ]
    out_specs = pl.BlockSpec((bm, d4), lambda i: (i, 0))

    out_padded = pl.pallas_call(
        _mlp_kernel,
        out_shape=jax.ShapeDtypeStruct((B_pad, d4), jnp.float32),
        grid_spec=pltpu.PrefetchScalarGridSpec(
            num_scalar_prefetch=0,
            grid=grid,
            in_specs=in_specs,
            out_specs=out_specs,
        ),
        compiler_params=pltpu.CompilerParams(
            dimension_semantics=("parallel",)),
    )(xp, w1p, b1p, w2p, b2p, w3p, b3p, w4p, b4p)

    return out_padded[:B, :out_dim]


def init_params(key, input_size):
    """PyTorch-style Kaiming-uniform-ish init; weights stored pre-transposed [in, out]."""
    sizes = [(input_size, 200), (200, 100), (100, 20), (20, 1)]
    params = {}
    for idx, (fan_in, fan_out) in enumerate(sizes, start=1):
        key, kw, kb = jax.random.split(key, 3)
        bound = 1.0 / jnp.sqrt(jnp.float32(fan_in))
        params[f"w{idx}"] = jax.random.uniform(
            kw, (fan_in, fan_out), jnp.float32, -bound, bound)
        params[f"b{idx}"] = jax.random.uniform(
            kb, (1, fan_out), jnp.float32, -bound, bound)
    return params


def mlp_reference_f32(x, p):
    h = jnp.maximum(x @ p["w1"] + p["b1"], 0.0)
    h = jnp.maximum(h @ p["w2"] + p["b2"], 0.0)
    h = jnp.maximum(h @ p["w3"] + p["b3"], 0.0)
    return jax.nn.sigmoid(h @ p["w4"] + p["b4"])


def mlp_reference_bf16(x, p):
    bf = lambda a: a.astype(jnp.bfloat16)
    dot = lambda a, b: jnp.dot(bf(a), bf(b), preferred_element_type=jnp.float32)
    h = jnp.maximum(dot(x, p["w1"]) + p["b1"], 0.0)
    h = jnp.maximum(dot(h, p["w2"]) + p["b2"], 0.0)
    h = jnp.maximum(dot(h, p["w3"]) + p["b3"], 0.0)
    return jax.nn.sigmoid(dot(h, p["w4"]) + p["b4"])


if __name__ == "__main__":
    # Small-shape analogue of the original script: n = 64 instead of 297,
    # input is the identity matrix (one one-hot row per sample).
    n = 64
    key = jax.random.PRNGKey(0)
    params = init_params(key, input_size=n)
    x = jnp.eye(n, dtype=jnp.float32)            # [64, 64]

    out = mlp_forward(x, params)                 # [64, 1]
    out = jax.block_until_ready(out)

    assert out.shape == (n, 1)
    # Tight check against a reference that uses the same bf16 matmul boundaries.
    ref_bf16 = mlp_reference_bf16(x, params)
    assert jnp.allclose(out, ref_bf16, atol=2e-3, rtol=2e-3), "mismatch vs bf16 reference"
    # Loose check against the full-f32 reference (bf16 rounding only).
    ref_f32 = mlp_reference_f32(x, params)
    assert jnp.allclose(out, ref_f32, atol=2e-2, rtol=2e-2), "mismatch vs f32 reference"
    print("KERNEL_OK")
</pallas_src>

<mosaic_0001>
module attributes {stable_mosaic.version = 11 : i64} {
  func.func @_mlp_kernel(%arg0: i32, %arg1: memref<64x128xbf16, #tpu.memory_space<vmem>>, %arg2: memref<128x256xbf16, #tpu.memory_space<vmem>>, %arg3: memref<1x256xf32, #tpu.memory_space<vmem>>, %arg4: memref<256x128xbf16, #tpu.memory_space<vmem>>, %arg5: memref<1x128xf32, #tpu.memory_space<vmem>>, %arg6: memref<128x128xbf16, #tpu.memory_space<vmem>>, %arg7: memref<1x128xf32, #tpu.memory_space<vmem>>, %arg8: memref<128x128xbf16, #tpu.memory_space<vmem>>, %arg9: memref<1x128xf32, #tpu.memory_space<vmem>>, %arg10: memref<64x128xf32, #tpu.memory_space<vmem>>) attributes {dimension_semantics = [#tpu.dimension_semantics<parallel>], iteration_bounds = array<i64: 1>, scalar_prefetch = 0 : i64, scratch_operands = 0 : i64, tpu.core_type = #tpu.core_type<tc>, window_params = [{transform_indices = @transform_0, window_bounds = array<i64: 64, 128>}, {pipeline_mode = #tpu.pipeline_mode<synchronous>, transform_indices = @transform_1, window_bounds = array<i64: 128, 256>}, {pipeline_mode = #tpu.pipeline_mode<synchronous>, transform_indices = @transform_2, window_bounds = array<i64: 1, 256>}, {pipeline_mode = #tpu.pipeline_mode<synchronous>, transform_indices = @transform_3, window_bounds = array<i64: 256, 128>}, {pipeline_mode = #tpu.pipeline_mode<synchronous>, transform_indices = @transform_4, window_bounds = array<i64: 1, 128>}, {pipeline_mode = #tpu.pipeline_mode<synchronous>, transform_indices = @transform_5, window_bounds = array<i64: 128, 128>}, {pipeline_mode = #tpu.pipeline_mode<synchronous>, transform_indices = @transform_6, window_bounds = array<i64: 1, 128>}, {pipeline_mode = #tpu.pipeline_mode<synchronous>, transform_indices = @transform_7, window_bounds = array<i64: 128, 128>}, {pipeline_mode = #tpu.pipeline_mode<synchronous>, transform_indices = @transform_8, window_bounds = array<i64: 1, 128>}, {transform_indices = @transform_9, window_bounds = array<i64: 64, 128>}]} {
    %c0 = arith.constant 0 : index
    %c0_0 = arith.constant 0 : index
    %0 = vector.load %arg1[%c0, %c0_0] : memref<64x128xbf16, #tpu.memory_space<vmem>>, vector<64x128xbf16>
    %c0_1 = arith.constant 0 : index
    %c0_2 = arith.constant 0 : index
    %1 = vector.load %arg2[%c0_1, %c0_2] : memref<128x256xbf16, #tpu.memory_space<vmem>>, vector<128x256xbf16>
    %cst = arith.constant dense<0.000000e+00> : vector<64x256xf32>
    %2 = tpu.matmul %0, %1, %cst {dimension_numbers = #tpu.dot_dimension_numbers<[1], [0], [0], [1], [0, 0, 1, 1], [], []>} : vector<64x128xbf16>, vector<128x256xbf16>, vector<64x256xf32> -> vector<64x256xf32>
    %c0_3 = arith.constant 0 : index
    %c0_4 = arith.constant 0 : index
    %3 = vector.load %arg3[%c0_3, %c0_4] : memref<1x256xf32, #tpu.memory_space<vmem>>, vector<1x256xf32>
    %4 = vector.broadcast %3 : vector<1x256xf32> to vector<64x256xf32>
    %5 = arith.addf %2, %4 : vector<64x256xf32>
    %cst_5 = arith.constant 0.000000e+00 : f32
    %6 = vector.broadcast %cst_5 : f32 to vector<64x256xf32>
    %7 = arith.maximumf %5, %6 : vector<64x256xf32>
    %8 = arith.truncf %7 : vector<64x256xf32> to vector<64x256xbf16>
    %c0_6 = arith.constant 0 : index
    %c0_7 = arith.constant 0 : index
    %9 = vector.load %arg4[%c0_6, %c0_7] : memref<256x128xbf16, #tpu.memory_space<vmem>>, vector<256x128xbf16>
    %cst_8 = arith.constant dense<0.000000e+00> : vector<64x128xf32>
    %10 = tpu.matmul %8, %9, %cst_8 {dimension_numbers = #tpu.dot_dimension_numbers<[1], [0], [0], [1], [0, 0, 1, 1], [], []>} : vector<64x256xbf16>, vector<256x128xbf16>, vector<64x128xf32> -> vector<64x128xf32>
    %c0_9 = arith.constant 0 : index
    %c0_10 = arith.constant 0 : index
    %11 = vector.load %arg5[%c0_9, %c0_10] : memref<1x128xf32, #tpu.memory_space<vmem>>, vector<1x128xf32>
    %12 = vector.broadcast %11 : vector<1x128xf32> to vector<64x128xf32>
    %13 = arith.addf %10, %12 : vector<64x128xf32>
    %cst_11 = arith.constant 0.000000e+00 : f32
    %14 = vector.broadcast %cst_11 : f32 to vector<64x128xf32>
    %15 = arith.maximumf %13, %14 : vector<64x128xf32>
    %16 = arith.truncf %15 : vector<64x128xf32> to vector<64x128xbf16>
    %c0_12 = arith.constant 0 : index
    %c0_13 = arith.constant 0 : index
    %17 = vector.load %arg6[%c0_12, %c0_13] : memref<128x128xbf16, #tpu.memory_space<vmem>>, vector<128x128xbf16>
    %cst_14 = arith.constant dense<0.000000e+00> : vector<64x128xf32>
    %18 = tpu.matmul %16, %17, %cst_14 {dimension_numbers = #tpu.dot_dimension_numbers<[1], [0], [0], [1], [0, 0, 1, 1], [], []>} : vector<64x128xbf16>, vector<128x128xbf16>, vector<64x128xf32> -> vector<64x128xf32>
    %c0_15 = arith.constant 0 : index
    %c0_16 = arith.constant 0 : index
    %19 = vector.load %arg7[%c0_15, %c0_16] : memref<1x128xf32, #tpu.memory_space<vmem>>, vector<1x128xf32>
    %20 = vector.broadcast %19 : vector<1x128xf32> to vector<64x128xf32>
    %21 = arith.addf %18, %20 : vector<64x128xf32>
    %cst_17 = arith.constant 0.000000e+00 : f32
    %22 = vector.broadcast %cst_17 : f32 to vector<64x128xf32>
    %23 = arith.maximumf %21, %22 : vector<64x128xf32>
    %24 = arith.truncf %23 : vector<64x128xf32> to vector<64x128xbf16>
    %c0_18 = arith.constant 0 : index
    %c0_19 = arith.constant 0 : index
    %25 = vector.load %arg8[%c0_18, %c0_19] : memref<128x128xbf16, #tpu.memory_space<vmem>>, vector<128x128xbf16>
    %cst_20 = arith.constant dense<0.000000e+00> : vector<64x128xf32>
    %26 = tpu.matmul %24, %25, %cst_20 {dimension_numbers = #tpu.dot_dimension_numbers<[1], [0], [0], [1], [0, 0, 1, 1], [], []>} : vector<64x128xbf16>, vector<128x128xbf16>, vector<64x128xf32> -> vector<64x128xf32>
    %c0_21 = arith.constant 0 : index
    %c0_22 = arith.constant 0 : index
    %27 = vector.load %arg9[%c0_21, %c0_22] : memref<1x128xf32, #tpu.memory_space<vmem>>, vector<1x128xf32>
    %28 = vector.broadcast %27 : vector<1x128xf32> to vector<64x128xf32>
    %29 = arith.addf %26, %28 : vector<64x128xf32>
    %cst_23 = arith.constant 5.000000e-01 : f32
    %30 = vector.broadcast %cst_23 : f32 to vector<64x128xf32>
    %31 = arith.mulf %30, %29 : vector<64x128xf32>
    %32 = math.tanh %31 : vector<64x128xf32>
    %cst_24 = arith.constant 5.000000e-01 : f32
    %33 = vector.broadcast %cst_24 : f32 to vector<64x128xf32>
    %34 = arith.mulf %33, %32 : vector<64x128xf32>
    %cst_25 = arith.constant 5.000000e-01 : f32
    %35 = vector.broadcast %cst_25 : f32 to vector<64x128xf32>
    %36 = arith.addf %34, %35 : vector<64x128xf32>
    %c0_26 = arith.constant 0 : index
    %c0_27 = arith.constant 0 : index
    %37 = vector.load %arg10[%c0_26, %c0_27] : memref<64x128xf32, #tpu.memory_space<vmem>>, vector<64x128xf32>
    tpu.vector_store %arg10[%c0_26, %c0_27], %36 {strides = array<i32>} : memref<64x128xf32, #tpu.memory_space<vmem>>, vector<64x128xf32>,
    return
  }
  func.func @transform_0(%arg0: i32) -> (i32, i32) {
    %c0_i32 = arith.constant 0 : i32
    %c0_i32_0 = arith.constant 0 : i32
    return %arg0, %c0_i32 : i32, i32
  }
  func.func @transform_1(%arg0: i32) -> (i32, i32) {
    %c0_i32 = arith.constant 0 : i32
    %c0_i32_0 = arith.constant 0 : i32
    %c0_i32_1 = arith.constant 0 : i32
    return %c0_i32, %c0_i32_0 : i32, i32
  }
  func.func @transform_2(%arg0: i32) -> (i32, i32) {
    %c0_i32 = arith.constant 0 : i32
    %c0_i32_0 = arith.constant 0 : i32
    %c0_i32_1 = arith.constant 0 : i32
    return %c0_i32, %c0_i32_0 : i32, i32
  }
  func.func @transform_3(%arg0: i32) -> (i32, i32) {
    %c0_i32 = arith.constant 0 : i32
    %c0_i32_0 = arith.constant 0 : i32
    %c0_i32_1 = arith.constant 0 : i32
    return %c0_i32, %c0_i32_0 : i32, i32
  }
  func.func @transform_4(%arg0: i32) -> (i32, i32) {
    %c0_i32 = arith.constant 0 : i32
    %c0_i32_0 = arith.constant 0 : i32
    %c0_i32_1 = arith.constant 0 : i32
    return %c0_i32, %c0_i32_0 : i32, i32
  }
  func.func @transform_5(%arg0: i32) -> (i32, i32) {
    %c0_i32 = arith.constant 0 : i32
    %c0_i32_0 = arith.constant 0 : i32
    %c0_i32_1 = arith.constant 0 : i32
    return %c0_i32, %c0_i32_0 : i32, i32
  }
  func.func @transform_6(%arg0: i32) -> (i32, i32) {
    %c0_i32 = arith.constant 0 : i32
    %c0_i32_0 = arith.constant 0 : i32
    %c0_i32_1 = arith.constant 0 : i32
    return %c0_i32, %c0_i32_0 : i32, i32
  }
  func.func @transform_7(%arg0: i32) -> (i32, i32) {
    %c0_i32 = arith.constant 0 : i32
    %c0_i32_0 = arith.constant 0 : i32
    %c0_i32_1 = arith.constant 0 : i32
    return %c0_i32, %c0_i32_0 : i32, i32
  }
  func.func @transform_8(%arg0: i32) -> (i32, i32) {
    %c0_i32 = arith.constant 0 : i32
    %c0_i32_0 = arith.constant 0 : i32
    %c0_i32_1 = arith.constant 0 : i32
    return %c0_i32, %c0_i32_0 : i32, i32
  }
  func.func @transform_9(%arg0: i32) -> (i32, i32) {
    %c0_i32 = arith.constant 0 : i32
    %c0_i32_0 = arith.constant 0 : i32
    return %arg0, %c0_i32 : i32, i32
  }
}

</mosaic_0001>

<llo_original>
// kernel: mlp_forward.1
$region0: #{mlp_forward.1}
  #allocation0 [shape = 'u32[]', space=smem, size = 0x4, offset = 0x4, fixed_abs, tag = 'smem constant byte address 0x4 - core index']
  #allocation1 [shape = 'u32[72,128]{1,0:T(1,128)}', space=vmem, size = 0x9000, scoped, tag = 'internal scratch']
  %s0 = inlined_call_operand.vmem [shape: bf16[64,128], index: 0, kind: input, shape index: {}]
  %s1 = inlined_call_operand.vmem [shape: bf16[128,256], index: 1, kind: input, shape index: {}]
  %s2 = inlined_call_operand.vmem [shape: f32[1,256], index: 2, kind: input, shape index: {}]
  %s3 = inlined_call_operand.vmem [shape: bf16[256,128], index: 3, kind: input, shape index: {}]
  %s4 = inlined_call_operand.vmem [shape: f32[1,128], index: 4, kind: input, shape index: {}]
  %s5 = inlined_call_operand.vmem [shape: bf16[128,128], index: 5, kind: input, shape index: {}]
  %s6 = inlined_call_operand.vmem [shape: f32[1,128], index: 6, kind: input, shape index: {}]
  %s7 = inlined_call_operand.vmem [shape: bf16[128,128], index: 7, kind: input, shape index: {}]
  %s8 = inlined_call_operand.vmem [shape: f32[1,128], index: 8, kind: input, shape index: {}]
  %s9 = inlined_call_operand.vmem [shape: f32[64,128], index: 9, kind: output, shape index: {}]
  %s10 = sld [smem:[#allocation0]]
  $region46: #{mlp_forward.1} parent=0
    _
  %s12 = ssub.s32 1, %s10
  %s13 = scalar_select 0, %s12, %s10
  // Predicated region
  $region2: #{mlp_forward.1} parent=0 // pred_check
    _
  $region3: #{mlp_forward.1} parent=0 // pred_check_branch
    %15 = sbr.rel (0) target = $region5
  $region4: #{mlp_forward.1} parent=0 // pred_region
    _
  $region5: #{mlp_forward.1} parent=0 // pred_fallthru
    _
  // Predicated region
  $region6: #{mlp_forward.1} parent=0 // pred_check
    _
  $region7: #{mlp_forward.1} parent=0 // pred_check_branch
    %17 = sbr.rel (0) target = $region9
  $region8: #{mlp_forward.1} parent=0 // pred_region
    _
  $region9: #{mlp_forward.1} parent=0 // pred_fallthru
    _
  // Predicated region
  $region10: #{mlp_forward.1} parent=0 // pred_check
    _
  $region11: #{mlp_forward.1} parent=0 // pred_check_branch
    %19 = sbr.rel (0) target = $region13
  $region12: #{mlp_forward.1} parent=0 // pred_region
    _
  $region13: #{mlp_forward.1} parent=0 // pred_fallthru
    _
  // Predicated region
  $region14: #{mlp_forward.1} parent=0 // pred_check
    _
  $region15: #{mlp_forward.1} parent=0 // pred_check_branch
    %21 = sbr.rel (0) target = $region17
  $region16: #{mlp_forward.1} parent=0 // pred_region
    _
  $region17: #{mlp_forward.1} parent=0 // pred_fallthru
    _
  // Predicated region
  $region18: #{mlp_forward.1} parent=0 // pred_check
    _
  $region19: #{mlp_forward.1} parent=0 // pred_check_branch
    %23 = sbr.rel (0) target = $region21
  $region20: #{mlp_forward.1} parent=0 // pred_region
    _
  $region21: #{mlp_forward.1} parent=0 // pred_fallthru
    _
  // Predicated region
  $region22: #{mlp_forward.1} parent=0 // pred_check
    _
  $region23: #{mlp_forward.1} parent=0 // pred_check_branch
    %25 = sbr.rel (0) target = $region25
  $region24: #{mlp_forward.1} parent=0 // pred_region
    _
  $region25: #{mlp_forward.1} parent=0 // pred_fallthru
    _
  // Predicated region
  $region26: #{mlp_forward.1} parent=0 // pred_check
    _
  $region27: #{mlp_forward.1} parent=0 // pred_check_branch
    %27 = sbr.rel (0) target = $region29
  $region28: #{mlp_forward.1} parent=0 // pred_region
    _
  $region29: #{mlp_forward.1} parent=0 // pred_fallthru
    _
  // Predicated region
  $region30: #{mlp_forward.1} parent=0 // pred_check
    _
  $region31: #{mlp_forward.1} parent=0 // pred_check_branch
    %29 = sbr.rel (0) target = $region33
  $region32: #{mlp_forward.1} parent=0 // pred_region
    _
  $region33: #{mlp_forward.1} parent=0 // pred_fallthru
    _
  // Predicated region
  $region34: #{mlp_forward.1} parent=0 // pred_check
    _
  $region35: #{mlp_forward.1} parent=0 // pred_check_branch
    %31 = sbr.rel (0) target = $region37
  $region36: #{mlp_forward.1} parent=0 // pred_region
    _
  $region37: #{mlp_forward.1} parent=0 // pred_fallthru
    _
  %v32 = vld [vmem:[%s0] sm:$0xf]
  %v33 = vld [vmem:[%s0 + $0x4] sm:$0xf]
  %v34 = vld [vmem:[%s0 + $0x8] sm:$0xf]
  %v35 = vld [vmem:[%s0 + $0xc] sm:$0xf]
  %v36 = vld [vmem:[%s0 + $0x10] sm:$0xf]
  %v37 = vld [vmem:[%s0 + $0x14] sm:$0xf]
  %v38 = vld [vmem:[%s0 + $0x18] sm:$0xf]
  %v39 = vld [vmem:[%s0 + $0x1c] sm:$0xf]
  %v40 = vld [vmem:[%s1] sm:$0xff]
  %v41 = vld [vmem:[%s1 + $0x8] sm:$0xff]
  %v42 = vld [vmem:[%s1 + $0x10] sm:$0xff]
  %v43 = vld [vmem:[%s1 + $0x18] sm:$0xff]
  %v44 = vld [vmem:[%s1 + $0x20] sm:$0xff]
  %v45 = vld [vmem:[%s1 + $0x28] sm:$0xff]
  %v46 = vld [vmem:[%s1 + $0x30] sm:$0xff]
  %v47 = vld [vmem:[%s1 + $0x38] sm:$0xff]
  %v48 = vld [vmem:[%s1 + $0x40] sm:$0xff]
  %v49 = vld [vmem:[%s1 + $0x48] sm:$0xff]
  %v50 = vld [vmem:[%s1 + $0x50] sm:$0xff]
  %v51 = vld [vmem:[%s1 + $0x58] sm:$0xff]
  %v52 = vld [vmem:[%s1 + $0x60] sm:$0xff]
  %v53 = vld [vmem:[%s1 + $0x68] sm:$0xff]
  %v54 = vld [vmem:[%s1 + $0x70] sm:$0xff]
  %v55 = vld [vmem:[%s1 + $0x78] sm:$0xff]
  %v56 = vld [vmem:[%s2] sm:$0x3]
  %v58 = vperm.slane %v56, 0
  %v59 = vperm.slane %v56, 1
  %v70 = vunpack.c.l.b16 %v32
  %v71 = vunpack.c.l.b16 %v33
  %v72 = vunpack.c.l.b16 %v34
  %v73 = vunpack.c.l.b16 %v35
  %v74 = vunpack.c.l.b16 %v36
  %v75 = vunpack.c.l.b16 %v37
  %v76 = vunpack.c.l.b16 %v38
  %v77 = vunpack.c.l.b16 %v39
  %v78 = vpack.c.b16 %v71, %v70
  %v79 = vpack.c.b16 %v73, %v72
  %v80 = vpack.c.b16 %v75, %v74
  %v81 = vpack.c.b16 %v77, %v76
  %v102 = vunpack.c.l.b16 %v40
  %v103 = vunpack.c.h.b16 %v40
  %v104 = vunpack.c.l.b16 %v41
  %v105 = vunpack.c.h.b16 %v41
  %v106 = vunpack.c.l.b16 %v42
  %v107 = vunpack.c.h.b16 %v42
  %v108 = vunpack.c.l.b16 %v43
  %v109 = vunpack.c.h.b16 %v43
  %v110 = vunpack.c.l.b16 %v44
  %v111 = vunpack.c.h.b16 %v44
  %v112 = vunpack.c.l.b16 %v45
  %v113 = vunpack.c.h.b16 %v45
  %v114 = vunpack.c.l.b16 %v46
  %v115 = vunpack.c.h.b16 %v46
  %v116 = vunpack.c.l.b16 %v47
  %v117 = vunpack.c.h.b16 %v47
  %v118 = vunpack.c.l.b16 %v48
  %v119 = vunpack.c.h.b16 %v48
  %v120 = vunpack.c.l.b16 %v49
  %v121 = vunpack.c.h.b16 %v49
  %v122 = vunpack.c.l.b16 %v50
  %v123 = vunpack.c.h.b16 %v50
  %v124 = vunpack.c.l.b16 %v51
  %v125 = vunpack.c.h.b16 %v51
  %v126 = vunpack.c.l.b16 %v52
  %v127 = vunpack.c.h.b16 %v52
  %v128 = vunpack.c.l.b16 %v53
  %v129 = vunpack.c.h.b16 %v53
  %v130 = vunpack.c.l.b16 %v54
  %v131 = vunpack.c.h.b16 %v54
  %v132 = vunpack.c.l.b16 %v55
  %v133 = vunpack.c.h.b16 %v55
  %v134 = vpack.c.b16 %v104, %v102
  %v135 = vpack.c.b16 %v105, %v103
  %v136 = vpack.c.b16 %v108, %v106
  %v137 = vpack.c.b16 %v109, %v107
  %v138 = vpack.c.b16 %v112, %v110
  %v139 = vpack.c.b16 %v113, %v111
  %v140 = vpack.c.b16 %v116, %v114
  %v141 = vpack.c.b16 %v117, %v115
  %v142 = vpack.c.b16 %v120, %v118
  %v143 = vpack.c.b16 %v121, %v119
  %v144 = vpack.c.b16 %v124, %v122
  %v145 = vpack.c.b16 %v125, %v123
  %v146 = vpack.c.b16 %v128, %v126
  %v147 = vpack.c.b16 %v129, %v127
  %v148 = vpack.c.b16 %v132, %v130
  %v149 = vpack.c.b16 %v133, %v131
  %166 = vmatpush.bf16.msra.mxu0 %v148
  %167 = vmatpush.bf16.msra.mxu0 %v146
  %168 = vmatpush.bf16.msra.mxu0 %v144
  %169 = vmatpush.bf16.msra.mxu0 %v142
  %170 = vmatpush.bf16.msra.mxu0 %v140
  %171 = vmatpush.bf16.msra.mxu0 %v138
  %172 = vmatpush.bf16.msra.mxu0 %v136
  %173 = vmatpush.bf16.msra.mxu0 %v134
  %174 = vmatmul.bf16.gmra.mxu0 %v78
  %v175 = vpop.f32.mrf.mxu0
  %v176 = vadd.f32 %v58, %v175
  %v177 = vpop.f32.mrf.mxu0
  %v178 = vadd.f32 %v58, %v177
  %179 = vmatmul.bf16.gmra.mxu0 %v79
  %v180 = vpop.f32.mrf.mxu0
  %v181 = vadd.f32 %v58, %v180
  %v182 = vpop.f32.mrf.mxu0
  %v183 = vadd.f32 %v58, %v182
  %184 = vmatmul.bf16.gmra.mxu0 %v80
  %v185 = vpop.f32.mrf.mxu0
  %v186 = vadd.f32 %v58, %v185
  %v187 = vpop.f32.mrf.mxu0
  %v188 = vadd.f32 %v58, %v187
  %189 = vmatmul.bf16.gmra.mxu0 %v81
  %v190 = vpop.f32.mrf.mxu0
  %v191 = vadd.f32 %v58, %v190
  %v192 = vpop.f32.mrf.mxu0
  %v193 = vadd.f32 %v58, %v192
  %194 = vdwg.mxu0
  %195 = vmatpush.bf16.msra.mxu0 %v149
  %196 = vmatpush.bf16.msra.mxu0 %v147
  %197 = vmatpush.bf16.msra.mxu0 %v145
  %198 = vmatpush.bf16.msra.mxu0 %v143
  %199 = vmatpush.bf16.msra.mxu0 %v141
  %200 = vmatpush.bf16.msra.mxu0 %v139
  %201 = vmatpush.bf16.msra.mxu0 %v137
  %202 = vmatpush.bf16.msra.mxu0 %v135
  %203 = vmatmul.bf16.gmra.mxu0 %v78
  %v204 = vpop.f32.mrf.mxu0
  %v205 = vadd.f32 %v59, %v204
  %v206 = vpop.f32.mrf.mxu0
  %v207 = vadd.f32 %v59, %v206
  %208 = vmatmul.bf16.gmra.mxu0 %v79
  %v209 = vpop.f32.mrf.mxu0
  %v210 = vadd.f32 %v59, %v209
  %v211 = vpop.f32.mrf.mxu0
  %v212 = vadd.f32 %v59, %v211
  %213 = vmatmul.bf16.gmra.mxu0 %v80
  %v214 = vpop.f32.mrf.mxu0
  %v215 = vadd.f32 %v59, %v214
  %v216 = vpop.f32.mrf.mxu0
  %v217 = vadd.f32 %v59, %v216
  %218 = vmatmul.bf16.gmra.mxu0 %v81
  %v219 = vpop.f32.mrf.mxu0
  %v220 = vadd.f32 %v59, %v219
  %v221 = vpop.f32.mrf.mxu0
  %v222 = vadd.f32 %v59, %v221
  %223 = vdwg.mxu0
  %v224 = vmax.f32 %v176, 0.0
  %v225 = vmax.f32 %v205, 0.0
  %v226 = vmax.f32 %v178, 0.0
  %v227 = vmax.f32 %v207, 0.0
  %v228 = vmax.f32 %v181, 0.0
  %v229 = vmax.f32 %v210, 0.0
  %v230 = vmax.f32 %v183, 0.0
  %v231 = vmax.f32 %v212, 0.0
  %v232 = vmax.f32 %v186, 0.0
  %v233 = vmax.f32 %v215, 0.0
  %v234 = vmax.f32 %v188, 0.0
  %v235 = vmax.f32 %v217, 0.0
  %v236 = vmax.f32 %v191, 0.0
  %v237 = vmax.f32 %v220, 0.0
  %v238 = vmax.f32 %v193, 0.0
  %v239 = vmax.f32 %v222, 0.0
  %v240 = vpack.c.bf16 %v226, %v224
  %v241 = vpack.c.bf16 %v227, %v225
  %v242 = vpack.c.bf16 %v230, %v228
  %v243 = vpack.c.bf16 %v231, %v229
  %v244 = vpack.c.bf16 %v234, %v232
  %v245 = vpack.c.bf16 %v235, %v233
  %v246 = vpack.c.bf16 %v238, %v236
  %v247 = vpack.c.bf16 %v239, %v237
  %v248 = vld [vmem:[%s3] sm:$0xf]
  %v249 = vld [vmem:[%s3 + $0x4] sm:$0xf]
  %v250 = vld [vmem:[%s3 + $0x8] sm:$0xf]
  %v251 = vld [vmem:[%s3 + $0xc] sm:$0xf]
  %v252 = vld [vmem:[%s3 + $0x10] sm:$0xf]
  %v253 = vld [vmem:[%s3 + $0x14] sm:$0xf]
  %v254 = vld [vmem:[%s3 + $0x18] sm:$0xf]
  %v255 = vld [vmem:[%s3 + $0x1c] sm:$0xf]
  %v256 = vld [vmem:[%s3 + $0x20] sm:$0xf]
  %v257 = vld [vmem:[%s3 + $0x24] sm:$0xf]
  %v258 = vld [vmem:[%s3 + $0x28] sm:$0xf]
  %v259 = vld [vmem:[%s3 + $0x2c] sm:$0xf]
  %v260 = vld [vmem:[%s3 + $0x30] sm:$0xf]
  %v261 = vld [vmem:[%s3 + $0x34] sm:$0xf]
  %v262 = vld [vmem:[%s3 + $0x38] sm:$0xf]
  %v263 = vld [vmem:[%s3 + $0x3c] sm:$0xf]
  %v264 = vld [vmem:[%s3 + $0x40] sm:$0xf]
  %v265 = vld [vmem:[%s3 + $0x44] sm:$0xf]
  %v266 = vld [vmem:[%s3 + $0x48] sm:$0xf]
  %v267 = vld [vmem:[%s3 + $0x4c] sm:$0xf]
  %v268 = vld [vmem:[%s3 + $0x50] sm:$0xf]
  %v269 = vld [vmem:[%s3 + $0x54] sm:$0xf]
  %v270 = vld [vmem:[%s3 + $0x58] sm:$0xf]
  %v271 = vld [vmem:[%s3 + $0x5c] sm:$0xf]
  %v272 = vld [vmem:[%s3 + $0x60] sm:$0xf]
  %v273 = vld [vmem:[%s3 + $0x64] sm:$0xf]
  %v274 = vld [vmem:[%s3 + $0x68] sm:$0xf]
  %v275 = vld [vmem:[%s3 + $0x6c] sm:$0xf]
  %v276 = vld [vmem:[%s3 + $0x70] sm:$0xf]
  %v277 = vld [vmem:[%s3 + $0x74] sm:$0xf]
  %v278 = vld [vmem:[%s3 + $0x78] sm:$0xf]
  %v279 = vld [vmem:[%s3 + $0x7c] sm:$0xf]
  %v280 = vld [vmem:[%s4] sm:$0x1]
  %v282 = vperm.slane %v280, 0
  %v316 = vunpack.c.l.b16 %v248
  %v317 = vunpack.c.l.b16 %v249
  %v318 = vunpack.c.l.b16 %v250
  %v319 = vunpack.c.l.b16 %v251
  %v320 = vunpack.c.l.b16 %v252
  %v321 = vunpack.c.l.b16 %v253
  %v322 = vunpack.c.l.b16 %v254
  %v323 = vunpack.c.l.b16 %v255
  %v324 = vunpack.c.l.b16 %v256
  %v325 = vunpack.c.l.b16 %v257
  %v326 = vunpack.c.l.b16 %v258
  %v327 = vunpack.c.l.b16 %v259
  %v328 = vunpack.c.l.b16 %v260
  %v329 = vunpack.c.l.b16 %v261
  %v330 = vunpack.c.l.b16 %v262
  %v331 = vunpack.c.l.b16 %v263
  %v332 = vunpack.c.l.b16 %v264
  %v333 = vunpack.c.l.b16 %v265
  %v334 = vunpack.c.l.b16 %v266
  %v335 = vunpack.c.l.b16 %v267
  %v336 = vunpack.c.l.b16 %v268
  %v337 = vunpack.c.l.b16 %v269
  %v338 = vunpack.c.l.b16 %v270
  %v339 = vunpack.c.l.b16 %v271
  %v340 = vunpack.c.l.b16 %v272
  %v341 = vunpack.c.l.b16 %v273
  %v342 = vunpack.c.l.b16 %v274
  %v343 = vunpack.c.l.b16 %v275
  %v344 = vunpack.c.l.b16 %v276
  %v345 = vunpack.c.l.b16 %v277
  %v346 = vunpack.c.l.b16 %v278
  %v347 = vunpack.c.l.b16 %v279
  %v348 = vpack.c.b16 %v317, %v316
  %v349 = vpack.c.b16 %v319, %v318
  %v350 = vpack.c.b16 %v321, %v320
  %v351 = vpack.c.b16 %v323, %v322
  %v352 = vpack.c.b16 %v325, %v324
  %v353 = vpack.c.b16 %v327, %v326
  %v354 = vpack.c.b16 %v329, %v328
  %v355 = vpack.c.b16 %v331, %v330
  %v356 = vpack.c.b16 %v333, %v332
  %v357 = vpack.c.b16 %v335, %v334
  %v358 = vpack.c.b16 %v337, %v336
  %v359 = vpack.c.b16 %v339, %v338
  %v360 = vpack.c.b16 %v341, %v340
  %v361 = vpack.c.b16 %v343, %v342
  %v362 = vpack.c.b16 %v345, %v344
  %v363 = vpack.c.b16 %v347, %v346
  %380 = vmatpush.bf16.msra.mxu0 %v355
  %381 = vmatpush.bf16.msra.mxu0 %v354
  %382 = vmatpush.bf16.msra.mxu0 %v353
  %383 = vmatpush.bf16.msra.mxu0 %v352
  %384 = vmatpush.bf16.msra.mxu0 %v351
  %385 = vmatpush.bf16.msra.mxu0 %v350
  %386 = vmatpush.bf16.msra.mxu0 %v349
  %387 = vmatpush.bf16.msra.mxu0 %v348
  %388 = vmatmul.bf16.gmra.mxu0 %v240
  %v389 = vpop.f32.mrf.mxu0
  %v390 = vadd.f32 %v282, %v389
  %v391 = vpop.f32.mrf.mxu0
  %v392 = vadd.f32 %v282, %v391
  %393 = vmatmul.bf16.gmra.mxu0 %v242
  %v394 = vpop.f32.mrf.mxu0
  %v395 = vadd.f32 %v282, %v394
  %v396 = vpop.f32.mrf.mxu0
  %v397 = vadd.f32 %v282, %v396
  %398 = vmatmul.bf16.gmra.mxu0 %v244
  %v399 = vpop.f32.mrf.mxu0
  %v400 = vadd.f32 %v282, %v399
  %v401 = vpop.f32.mrf.mxu0
  %v402 = vadd.f32 %v282, %v401
  %403 = vmatmul.bf16.gmra.mxu0 %v246
  %v404 = vpop.f32.mrf.mxu0
  %v405 = vadd.f32 %v282, %v404
  %v406 = vpop.f32.mrf.mxu0
  %v407 = vadd.f32 %v282, %v406
  %408 = vdwg.mxu0
  %409 = vmatpush.bf16.msra.mxu0 %v363
  %410 = vmatpush.bf16.msra.mxu0 %v362
  %411 = vmatpush.bf16.msra.mxu0 %v361
  %412 = vmatpush.bf16.msra.mxu0 %v360
  %413 = vmatpush.bf16.msra.mxu0 %v359
  %414 = vmatpush.bf16.msra.mxu0 %v358
  %415 = vmatpush.bf16.msra.mxu0 %v357
  %416 = vmatpush.bf16.msra.mxu0 %v356
  %417 = vmatmul.bf16.gmra.mxu0 %v241
  %v418 = vpop.f32.mrf.mxu0
  %v419 = vadd.f32 %v390, %v418
  %v420 = vpop.f32.mrf.mxu0
  %v421 = vadd.f32 %v392, %v420
  %422 = vmatmul.bf16.gmra.mxu0 %v243
  %v423 = vpop.f32.mrf.mxu0
  %v424 = vadd.f32 %v395, %v423
  %v425 = vpop.f32.mrf.mxu0
  %v426 = vadd.f32 %v397, %v425
  %427 = vmatmul.bf16.gmra.mxu0 %v245
  %v428 = vpop.f32.mrf.mxu0
  %v429 = vadd.f32 %v400, %v428
  %v430 = vpop.f32.mrf.mxu0
  %v431 = vadd.f32 %v402, %v430
  %432 = vmatmul.bf16.gmra.mxu0 %v247
  %v433 = vpop.f32.mrf.mxu0
  %v434 = vadd.f32 %v405, %v433
  %v435 = vpop.f32.mrf.mxu0
  %v436 = vadd.f32 %v407, %v435
  %437 = vdwg.mxu0
  %v438 = vmax.f32 %v419, 0.0
  %v439 = vmax.f32 %v421, 0.0
  %v440 = vmax.f32 %v424, 0.0
  %v441 = vmax.f32 %v426, 0.0
  %v442 = vmax.f32 %v429, 0.0
  %v443 = vmax.f32 %v431, 0.0
  %v444 = vmax.f32 %v434, 0.0
  %v445 = vmax.f32 %v436, 0.0
  %v446 = vpack.c.bf16 %v439, %v438
  %v447 = vpack.c.bf16 %v441, %v440
  %v448 = vpack.c.bf16 %v443, %v442
  %v449 = vpack.c.bf16 %v445, %v444
  %v450 = vld [vmem:[%s5] sm:$0xf]
  %v451 = vld [vmem:[%s5 + $0x4] sm:$0xf]
  %v452 = vld [vmem:[%s5 + $0x8] sm:$0xf]
  %v453 = vld [vmem:[%s5 + $0xc] sm:$0xf]
  %v454 = vld [vmem:[%s5 + $0x10] sm:$0xf]
  %v455 = vld [vmem:[%s5 + $0x14] sm:$0xf]
  %v456 = vld [vmem:[%s5 + $0x18] sm:$0xf]
  %v457 = vld [vmem:[%s5 + $0x1c] sm:$0xf]
  %v458 = vld [vmem:[%s5 + $0x20] sm:$0xf]
  %v459 = vld [vmem:[%s5 + $0x24] sm:$0xf]
  %v460 = vld [vmem:[%s5 + $0x28] sm:$0xf]
  %v461 = vld [vmem:[%s5 + $0x2c] sm:$0xf]
  %v462 = vld [vmem:[%s5 + $0x30] sm:$0xf]
  %v463 = vld [vmem:[%s5 + $0x34] sm:$0xf]
  %v464 = vld [vmem:[%s5 + $0x38] sm:$0xf]
  %v465 = vld [vmem:[%s5 + $0x3c] sm:$0xf]
  %v466 = vld [vmem:[%s6] sm:$0x1]
  %v468 = vperm.slane %v466, 0
  %v486 = vunpack.c.l.b16 %v450
  %v487 = vunpack.c.l.b16 %v451
  %v488 = vunpack.c.l.b16 %v452
  %v489 = vunpack.c.l.b16 %v453
  %v490 = vunpack.c.l.b16 %v454
  %v491 = vunpack.c.l.b16 %v455
  %v492 = vunpack.c.l.b16 %v456
  %v493 = vunpack.c.l.b16 %v457
  %v494 = vunpack.c.l.b16 %v458
  %v495 = vunpack.c.l.b16 %v459
  %v496 = vunpack.c.l.b16 %v460
  %v497 = vunpack.c.l.b16 %v461
  %v498 = vunpack.c.l.b16 %v462
  %v499 = vunpack.c.l.b16 %v463
  %v500 = vunpack.c.l.b16 %v464
  %v501 = vunpack.c.l.b16 %v465
  %v502 = vpack.c.b16 %v487, %v486
  %v503 = vpack.c.b16 %v489, %v488
  %v504 = vpack.c.b16 %v491, %v490
  %v505 = vpack.c.b16 %v493, %v492
  %v506 = vpack.c.b16 %v495, %v494
  %v507 = vpack.c.b16 %v497, %v496
  %v508 = vpack.c.b16 %v499, %v498
  %v509 = vpack.c.b16 %v501, %v500
  %518 = vmatpush.bf16.msra.mxu0 %v509
  %519 = vmatpush.bf16.msra.mxu0 %v508
  %520 = vmatpush.bf16.msra.mxu0 %v507
  %521 = vmatpush.bf16.msra.mxu0 %v506
  %522 = vmatpush.bf16.msra.mxu0 %v505
  %523 = vmatpush.bf16.msra.mxu0 %v504
  %524 = vmatpush.bf16.msra.mxu0 %v503
  %525 = vmatpush.bf16.msra.mxu0 %v502
  %526 = vmatmul.bf16.gmra.mxu0 %v446
  %v527 = vpop.f32.mrf.mxu0
  %v528 = vadd.f32 %v468, %v527
  %v529 = vpop.f32.mrf.mxu0
  %v530 = vadd.f32 %v468, %v529
  %531 = vmatmul.bf16.gmra.mxu0 %v447
  %v532 = vpop.f32.mrf.mxu0
  %v533 = vadd.f32 %v468, %v532
  %v534 = vpop.f32.mrf.mxu0
  %v535 = vadd.f32 %v468, %v534
  %536 = vmatmul.bf16.gmra.mxu0 %v448
  %v537 = vpop.f32.mrf.mxu0
  %v538 = vadd.f32 %v468, %v537
  %v539 = vpop.f32.mrf.mxu0
  %v540 = vadd.f32 %v468, %v539
  %541 = vmatmul.bf16.gmra.mxu0 %v449
  %v542 = vpop.f32.mrf.mxu0
  %v543 = vadd.f32 %v468, %v542
  %v544 = vpop.f32.mrf.mxu0
  %v545 = vadd.f32 %v468, %v544
  %546 = vdwg.mxu0
  %v547 = vmax.f32 %v528, 0.0
  %v548 = vmax.f32 %v530, 0.0
  %v549 = vmax.f32 %v533, 0.0
  %v550 = vmax.f32 %v535, 0.0
  %v551 = vmax.f32 %v538, 0.0
  %v552 = vmax.f32 %v540, 0.0
  %v553 = vmax.f32 %v543, 0.0
  %v554 = vmax.f32 %v545, 0.0
  %v555 = vpack.c.bf16 %v548, %v547
  %v556 = vpack.c.bf16 %v550, %v549
  %v557 = vpack.c.bf16 %v552, %v551
  %v558 = vpack.c.bf16 %v554, %v553
  %v559 = vld [vmem:[%s7] sm:$0xf]
  %v560 = vld [vmem:[%s7 + $0x4] sm:$0xf]
  %v561 = vld [vmem:[%s7 + $0x8] sm:$0xf]
  %v562 = vld [vmem:[%s7 + $0xc] sm:$0xf]
  %v563 = vld [vmem:[%s7 + $0x10] sm:$0xf]
  %v564 = vld [vmem:[%s7 + $0x14] sm:$0xf]
  %v565 = vld [vmem:[%s7 + $0x18] sm:$0xf]
  %v566 = vld [vmem:[%s7 + $0x1c] sm:$0xf]
  %v567 = vld [vmem:[%s7 + $0x20] sm:$0xf]
  %v568 = vld [vmem:[%s7 + $0x24] sm:$0xf]
  %v569 = vld [vmem:[%s7 + $0x28] sm:$0xf]
  %v570 = vld [vmem:[%s7 + $0x2c] sm:$0xf]
  %v571 = vld [vmem:[%s7 + $0x30] sm:$0xf]
  %v572 = vld [vmem:[%s7 + $0x34] sm:$0xf]
  %v573 = vld [vmem:[%s7 + $0x38] sm:$0xf]
  %v574 = vld [vmem:[%s7 + $0x3c] sm:$0xf]
  %v575 = vld [vmem:[%s8] sm:$0x1]
  %v577 = vperm.slane %v575, 0
  %v595 = vunpack.c.l.b16 %v559
  %v596 = vunpack.c.l.b16 %v560
  %v597 = vunpack.c.l.b16 %v561
  %v598 = vunpack.c.l.b16 %v562
  %v599 = vunpack.c.l.b16 %v563
  %v600 = vunpack.c.l.b16 %v564
  %v601 = vunpack.c.l.b16 %v565
  %v602 = vunpack.c.l.b16 %v566
  %v603 = vunpack.c.l.b16 %v567
  %v604 = vunpack.c.l.b16 %v568
  %v605 = vunpack.c.l.b16 %v569
  %v606 = vunpack.c.l.b16 %v570
  %v607 = vunpack.c.l.b16 %v571
  %v608 = vunpack.c.l.b16 %v572
  %v609 = vunpack.c.l.b16 %v573
  %v610 = vunpack.c.l.b16 %v574
  %v611 = vpack.c.b16 %v596, %v595
  %v612 = vpack.c.b16 %v598, %v597
  %v613 = vpack.c.b16 %v600, %v599
  %v614 = vpack.c.b16 %v602, %v601
  %v615 = vpack.c.b16 %v604, %v603
  %v616 = vpack.c.b16 %v606, %v605
  %v617 = vpack.c.b16 %v608, %v607
  %v618 = vpack.c.b16 %v610, %v609
  %627 = vmatpush.bf16.msra.mxu0 %v618
  %628 = vmatpush.bf16.msra.mxu0 %v617
  %629 = vmatpush.bf16.msra.mxu0 %v616
  %630 = vmatpush.bf16.msra.mxu0 %v615
  %631 = vmatpush.bf16.msra.mxu0 %v614
  %632 = vmatpush.bf16.msra.mxu0 %v613
  %633 = vmatpush.bf16.msra.mxu0 %v612
  %634 = vmatpush.bf16.msra.mxu0 %v611
  %635 = vmatmul.bf16.gmra.mxu0 %v555
  %v636 = vpop.f32.mrf.mxu0
  %v637 = vadd.f32 %v577, %v636
  %v638 = vpop.f32.mrf.mxu0
  %v639 = vadd.f32 %v577, %v638
  %640 = vmatmul.bf16.gmra.mxu0 %v556
  %v641 = vpop.f32.mrf.mxu0
  %v642 = vadd.f32 %v577, %v641
  %v643 = vpop.f32.mrf.mxu0
  %v644 = vadd.f32 %v577, %v643
  %645 = vmatmul.bf16.gmra.mxu0 %v557
  %v646 = vpop.f32.mrf.mxu0
  %v647 = vadd.f32 %v577, %v646
  %v648 = vpop.f32.mrf.mxu0
  %v649 = vadd.f32 %v577, %v648
  %650 = vmatmul.bf16.gmra.mxu0 %v558
  %v651 = vpop.f32.mrf.mxu0
  %v652 = vadd.f32 %v577, %v651
  %v653 = vpop.f32.mrf.mxu0
  %v654 = vadd.f32 %v577, %v653
  %655 = vdwg.mxu0
  %v656 = vmul.f32 %v637, 0.5
  %v657 = vmul.f32 %v639, 0.5
  %v658 = vmul.f32 %v642, 0.5
  %v659 = vmul.f32 %v644, 0.5
  %v660 = vmul.f32 %v647, 0.5
  %v661 = vmul.f32 %v649, 0.5
  %v662 = vmul.f32 %v652, 0.5
  %v663 = vmul.f32 %v654, 0.5
  %v664 = vtanh.pop %v656
  %v665 = vtanh.pop %v657
  %v666 = vtanh.pop %v658
  %v667 = vtanh.pop %v659
  %v668 = vtanh.pop %v660
  %v669 = vtanh.pop %v661
  %v670 = vtanh.pop %v662
  %v671 = vtanh.pop %v663
  %v672 = vmul.f32 %v664, 0.5
  %v673 = vmul.f32 %v665, 0.5
  %v674 = vmul.f32 %v666, 0.5
  %v675 = vmul.f32 %v667, 0.5
  %v676 = vmul.f32 %v668, 0.5
  %v677 = vmul.f32 %v669, 0.5
  %v678 = vmul.f32 %v670, 0.5
  %v679 = vmul.f32 %v671, 0.5
  %v680 = vadd.f32 %v672, 0.5
  %v681 = vadd.f32 %v673, 0.5
  %v682 = vadd.f32 %v674, 0.5
  %v683 = vadd.f32 %v675, 0.5
  %v684 = vadd.f32 %v676, 0.5
  %v685 = vadd.f32 %v677, 0.5
  %v686 = vadd.f32 %v678, 0.5
  %v687 = vadd.f32 %v679, 0.5
  %688 = vst [vmem:[%s9] sm:$0xff] %v680
  %689 = vst [vmem:[%s9 + $0x8] sm:$0xff] %v681
  %690 = vst [vmem:[%s9 + $0x10] sm:$0xff] %v682
  %691 = vst [vmem:[%s9 + $0x18] sm:$0xff] %v683
  %692 = vst [vmem:[%s9 + $0x20] sm:$0xff] %v684
  %693 = vst [vmem:[%s9 + $0x28] sm:$0xff] %v685
  %694 = vst [vmem:[%s9 + $0x30] sm:$0xff] %v686
  %695 = vst [vmem:[%s9 + $0x38] sm:$0xff] %v687
  // Predicated region
  $region38: #{mlp_forward.1} parent=0 // pred_check
    _
  $region39: #{mlp_forward.1} parent=0 // pred_check_branch
    %697 = sbr.rel (0) target = $region41
  $region40: #{mlp_forward.1} parent=0 // pred_region
    _
  $region41: #{mlp_forward.1} parent=0 // pred_fallthru
    _
  // Predicated region
  $region42: #{mlp_forward.1} parent=0 // pred_check
    _
  $region43: #{mlp_forward.1} parent=0 // pred_check_branch
    %699 = sbr.rel (0) target = $region45
  $region44: #{mlp_forward.1} parent=0 // pred_region
    _
  $region45: #{mlp_forward.1} parent=0 // pred_fallthru
    _

</llo_original>
